<compile_context>
chip_gen: v7x
topology: tpu7x:2x2x1
jax: 0.10.0
libtpu: 0.0.40
codegen_flags: <defaults>
</compile_context>

<pallas_src>
import functools

import jax
import jax.numpy as jnp
from jax.experimental import pallas as pl
from jax.experimental.pallas import tpu as pltpu

LANES = 128
SUBLANES = 8
MAX_ROW_TILE = 4096  # 4096 * 128 * 4 B = 2 MiB per input buffer per grid step

# BLOSS constants (self.w_1 / self.y in the PyTorch module).
W_1 = (0.0, 1.0, 2.0, 3.0, 4.0, 5.0)
Y_THR = (10.0, 20.0, 30.0, 40.0, 50.0, 60.0)


def _round_up(v, m):
    return ((v + m - 1) // m) * m


def _bloss_weight(t):
    """Sequential in-place thresholding, exactly as the PyTorch loop does it."""
    w = t
    for w_val, thr in zip(W_1, Y_THR):
        w = jnp.where(w < jnp.float32(thr), jnp.float32(w_val), w)
    return w


def _bloss_kernel(x_ref, y_ref, partial_ref, *, n_elems, row_tile, needs_mask):
    """One (row_tile, 128) tile -> one (8, 128) partial-sum output block."""
    x = x_ref[...].astype(jnp.float32)
    y = y_ref[...].astype(jnp.float32)

    w = _bloss_weight(y)
    d = x - y
    # mean(w*d^2) + mean(w*|d|) == mean(w*(d^2 + |d|)): fuse the two sums.
    val = w * (d * d + jnp.abs(d))

    if needs_mask:
        # Mask the ragged tail (zero-pad region and/or out-of-bounds rows of a
        # partial last block).  A select is used, so pad contents (even inf or
        # nan from an out-of-bounds block) cannot leak into the result.  This
        # branch is only compiled in when the tail actually exists; the common
        # aligned case pays nothing.
        i = pl.program_id(0)
        row = jax.lax.broadcasted_iota(jnp.int32, val.shape, 0) + i * row_tile
        col = jax.lax.broadcasted_iota(jnp.int32, val.shape, 1)
        val = jnp.where(row * LANES + col < n_elems, val, jnp.float32(0.0))

    # Reduce whole-vreg row groups only (cheap VPU adds hidden under the DMA);
    # the single cross-lane reduction happens once in the wrapper.
    red = jnp.sum(val.reshape(row_tile // SUBLANES, SUBLANES, LANES), axis=0)
    partial_ref[...] = red


def bloss(inputs, target, *, max_row_tile=MAX_ROW_TILE):
    """Pallas equivalent of BLOSS.forward(input, target). Returns a scalar f32."""
    assert inputs.shape == target.shape, "input and target must share a shape"
    n = inputs.size

    xf = jnp.ravel(inputs)
    yf = jnp.ravel(target)

    # Lane-dense (rows, 128) slab with rows a multiple of 8.  The pad (and its
    # HBM copy) only triggers when n % 1024 != 0; no wrapper-side dtype cast —
    # sub-f32 inputs are upcast in vregs inside the kernel.
    padded = max(SUBLANES * LANES, _round_up(n, SUBLANES * LANES))
    if padded != n:
        xf = jnp.pad(xf, (0, padded - n))
        yf = jnp.pad(yf, (0, padded - n))
    rows = padded // LANES
    x2 = xf.reshape(rows, LANES)
    y2 = yf.reshape(rows, LANES)

    # Tile selection: single grid step for small inputs; otherwise ~2 MiB f32
    # per input buffer (2 inputs x 2 pipeline buffers = 8 MiB VMEM, well under
    # the 16 MiB default scoped VMEM on v5e and 32 MiB on v6e/v7x).
    row_tile = min(max_row_tile, rows)          # both are multiples of 8
    num_tiles = pl.cdiv(rows, row_tile)
    needs_mask = (padded != n) or (rows % row_tile != 0)

    kernel = functools.partial(
        _bloss_kernel, n_elems=n, row_tile=row_tile, needs_mask=needs_mask)

    partials = pl.pallas_call(
        kernel,
        out_shape=jax.ShapeDtypeStruct((num_tiles * SUBLANES, LANES), jnp.float32),
        grid_spec=pltpu.PrefetchScalarGridSpec(
            num_scalar_prefetch=0,
            grid=(num_tiles,),
            in_specs=[
                pl.BlockSpec((row_tile, LANES), lambda i: (i, 0)),
                pl.BlockSpec((row_tile, LANES), lambda i: (i, 0)),
            ],
            out_specs=pl.BlockSpec((SUBLANES, LANES), lambda i: (i, 0)),
        ),
        compiler_params=pltpu.CompilerParams(
            # Each step writes its own partial block (no carried accumulator),
            # so the grid axis is parallel and v7x can use both TensorCores.
            dimension_semantics=("parallel",),
        ),
        # Advisory hint for the XLA scheduler: this is a memory-bound stream
        # of two f32 inputs with light elementwise work.
        cost_estimate=pl.CostEstimate(
            flops=16 * n,
            transcendentals=0,
            bytes_accessed=2 * padded * 4 + num_tiles * SUBLANES * LANES * 4,
        ),
    )(x2, y2)

    # Final cross-tile / cross-lane reduction; the two means share n.
    return jnp.sum(partials) / jnp.float32(n)


def _reference(inputs, target):
    """Pure-JAX mirror of the PyTorch forward (sequential thresholding)."""
    w = _bloss_weight(target.astype(jnp.float32))
    d = inputs.astype(jnp.float32) - target.astype(jnp.float32)
    return jnp.mean(w * d * d) + jnp.mean(w * jnp.abs(d))


if __name__ == "__main__":
    key = jax.random.PRNGKey(0)
    kx, ky = jax.random.split(key)
    shape = (2, 4, 16, 16)
    # Target values spanning all thresholds (some < 10, some in [10,60), some >= 60).
    target = jax.random.uniform(ky, shape, dtype=jnp.float32, minval=0.0, maxval=80.0)
    inputs = target + jax.random.normal(kx, shape, dtype=jnp.float32)

    out = bloss(inputs, target)
    jax.block_until_ready(out)

    ref = _reference(inputs, target)
    assert jnp.allclose(out, ref, rtol=1e-4, atol=1e-5), (out, ref)

    # Exercise the ragged-tail / multi-tile path as well (n % 1024 != 0).
    shape2 = (3, 5, 17)
    t2 = jax.random.uniform(jax.random.PRNGKey(1), shape2, dtype=jnp.float32,
                            minval=0.0, maxval=80.0)
    x2 = t2 + jax.random.normal(jax.random.PRNGKey(2), shape2, dtype=jnp.float32)
    out2 = bloss(x2, t2, max_row_tile=8)
    jax.block_until_ready(out2)
    assert jnp.allclose(out2, _reference(x2, t2), rtol=1e-4, atol=1e-5), (out2,)

    print("KERNEL_OK")
</pallas_src>

<mosaic_0001>
module attributes {stable_mosaic.version = 11 : i64} {
  func.func @_bloss_kernel(%arg0: i32, %arg1: memref<16x128xf32, #tpu.memory_space<vmem>>, %arg2: memref<16x128xf32, #tpu.memory_space<vmem>>, %arg3: memref<8x128xf32, #tpu.memory_space<vmem>>) attributes {dimension_semantics = [#tpu.dimension_semantics<parallel>], iteration_bounds = array<i64: 1>, scalar_prefetch = 0 : i64, scratch_operands = 0 : i64, tpu.core_type = #tpu.core_type<tc>, window_params = [{transform_indices = @transform_0, window_bounds = array<i64: 16, 128>}, {transform_indices = @transform_1, window_bounds = array<i64: 16, 128>}, {transform_indices = @transform_2, window_bounds = array<i64: 8, 128>}]} {
    %c0 = arith.constant 0 : index
    %c0_0 = arith.constant 0 : index
    %0 = vector.load %arg1[%c0, %c0_0] : memref<16x128xf32, #tpu.memory_space<vmem>>, vector<16x128xf32>
    %c0_1 = arith.constant 0 : index
    %c0_2 = arith.constant 0 : index
    %1 = vector.load %arg2[%c0_1, %c0_2] : memref<16x128xf32, #tpu.memory_space<vmem>>, vector<16x128xf32>
    %cst = arith.constant 1.000000e+01 : f32
    %2 = vector.broadcast %cst : f32 to vector<16x128xf32>
    %3 = arith.cmpf olt, %1, %2 : vector<16x128xf32>
    %cst_3 = arith.constant 0.000000e+00 : f32
    %4 = vector.broadcast %cst_3 : f32 to vector<16x128xf32>
    %5 = arith.select %3, %4, %1 : vector<16x128xi1>, vector<16x128xf32>
    %cst_4 = arith.constant 2.000000e+01 : f32
    %6 = vector.broadcast %cst_4 : f32 to vector<16x128xf32>
    %7 = arith.cmpf olt, %5, %6 : vector<16x128xf32>
    %cst_5 = arith.constant 1.000000e+00 : f32
    %8 = vector.broadcast %cst_5 : f32 to vector<16x128xf32>
    %9 = arith.select %7, %8, %5 : vector<16x128xi1>, vector<16x128xf32>
    %cst_6 = arith.constant 3.000000e+01 : f32
    %10 = vector.broadcast %cst_6 : f32 to vector<16x128xf32>
    %11 = arith.cmpf olt, %9, %10 : vector<16x128xf32>
    %cst_7 = arith.constant 2.000000e+00 : f32
    %12 = vector.broadcast %cst_7 : f32 to vector<16x128xf32>
    %13 = arith.select %11, %12, %9 : vector<16x128xi1>, vector<16x128xf32>
    %cst_8 = arith.constant 4.000000e+01 : f32
    %14 = vector.broadcast %cst_8 : f32 to vector<16x128xf32>
    %15 = arith.cmpf olt, %13, %14 : vector<16x128xf32>
    %cst_9 = arith.constant 3.000000e+00 : f32
    %16 = vector.broadcast %cst_9 : f32 to vector<16x128xf32>
    %17 = arith.select %15, %16, %13 : vector<16x128xi1>, vector<16x128xf32>
    %cst_10 = arith.constant 5.000000e+01 : f32
    %18 = vector.broadcast %cst_10 : f32 to vector<16x128xf32>
    %19 = arith.cmpf olt, %17, %18 : vector<16x128xf32>
    %cst_11 = arith.constant 4.000000e+00 : f32
    %20 = vector.broadcast %cst_11 : f32 to vector<16x128xf32>
    %21 = arith.select %19, %20, %17 : vector<16x128xi1>, vector<16x128xf32>
    %cst_12 = arith.constant 6.000000e+01 : f32
    %22 = vector.broadcast %cst_12 : f32 to vector<16x128xf32>
    %23 = arith.cmpf olt, %21, %22 : vector<16x128xf32>
    %cst_13 = arith.constant 5.000000e+00 : f32
    %24 = vector.broadcast %cst_13 : f32 to vector<16x128xf32>
    %25 = arith.select %23, %24, %21 : vector<16x128xi1>, vector<16x128xf32>
    %26 = arith.subf %0, %1 : vector<16x128xf32>
    %27 = arith.mulf %26, %26 : vector<16x128xf32>
    %28 = math.absf %26 : vector<16x128xf32>
    %29 = arith.addf %27, %28 : vector<16x128xf32>
    %30 = arith.mulf %25, %29 : vector<16x128xf32>
    %31 = vector.shape_cast %30 : vector<16x128xf32> to vector<2x8x128xf32>
    %cst_14 = arith.constant dense<0.000000e+00> : vector<8x128xf32>
    %32 = vector.multi_reduction <add>, %31, %cst_14 [0] : vector<2x8x128xf32> to vector<8x128xf32>
    %c0_15 = arith.constant 0 : index
    %c0_16 = arith.constant 0 : index
    %33 = vector.load %arg3[%c0_15, %c0_16] : memref<8x128xf32, #tpu.memory_space<vmem>>, vector<8x128xf32>
    tpu.vector_store %arg3[%c0_15, %c0_16], %32 {strides = array<i32>} : memref<8x128xf32, #tpu.memory_space<vmem>>, vector<8x128xf32>,
    return
  }
  func.func @transform_0(%arg0: i32) -> (i32, i32) {
    %c0_i32 = arith.constant 0 : i32
    %c0_i32_0 = arith.constant 0 : i32
    return %arg0, %c0_i32 : i32, i32
  }
  func.func @transform_1(%arg0: i32) -> (i32, i32) {
    %c0_i32 = arith.constant 0 : i32
    %c0_i32_0 = arith.constant 0 : i32
    return %arg0, %c0_i32 : i32, i32
  }
  func.func @transform_2(%arg0: i32) -> (i32, i32) {
    %c0_i32 = arith.constant 0 : i32
    %c0_i32_0 = arith.constant 0 : i32
    return %arg0, %c0_i32 : i32, i32
  }
}

</mosaic_0001>

<llo_original>
// kernel: tpu_custom_call.1
$region0: #{tpu_custom_call.1}
  #allocation0 [shape = 'u32[]', space=smem, size = 0x4, offset = 0x4, fixed_abs, tag = 'smem constant byte address 0x4 - core index']
  #allocation1 [shape = 'u32[144,128]{1,0:T(1,128)}', space=vmem, size = 0x12000, scoped, tag = 'internal scratch']
  %s0 = inlined_call_operand.hbm [shape: f32[16,128], index: 0, kind: input, shape index: {}]
  %s1 = inlined_call_operand.hbm [shape: f32[16,128], index: 1, kind: input, shape index: {}]
  %s2 = inlined_call_operand.hbm [shape: f32[8,128], index: 2, kind: output, shape index: {}]
  %s3 = sld [smem:[#allocation0]]
  $region26: #{tpu_custom_call.1} parent=0
    _
  %s5 = ssub.s32 1, %s3
  %s6 = scalar_select 0, %s5, %s3
  $region1: #{tpu_custom_call.1} parent=0
    #allocation2 [shape = 'u8[8192]{0}', space=vmem, size = 0x2000, scoped, tag = 'input window, operand 0, single buffered']
    #allocation3 [shape = 's32[1]{0}', space=sflag, size = 0x4, scoped, tag = 'scoped memory for tpu_custom_call.1']
    #allocation4 [shape = 's32[1]{0}', space=sflag, size = 0x4, scoped, tag = 'scoped memory for tpu_custom_call.1']
    #allocation5 [shape = 'u8[8192]{0}', space=vmem, size = 0x2000, scoped, tag = 'input window, operand 1, single buffered']
    #allocation6 [shape = 's32[1]{0}', space=sflag, size = 0x4, scoped, tag = 'scoped memory for tpu_custom_call.1']
    #allocation7 [shape = 'u8[4096]{0}', space=vmem, size = 0x1000, scoped, tag = 'output window, operand 0, single buffered']
    %7 = vsyncpa [#allocation3], 0
    %8 = vsyncpa [#allocation6], 0
    %9 = vsyncpa [#allocation4], 0
    // Predicated region
    $region2: #{tpu_custom_call.1} parent=1 // pred_check
      _
    $region3: #{tpu_custom_call.1} parent=1 // pred_check_branch
      %11 = sbr.rel (0) target = $region5
    $region4: #{tpu_custom_call.1} parent=1 // pred_region
      %s13 = ssub.s32 256, 256
      %14 = vsyncadd [#allocation3], %s13
      %s15 = sshll.u32 [#allocation2], 4
      %s16 = int_to_ptr.vmem [resolvable:$true] %s15
      %21 = dma.hbm_to_vmem [thread:$0]  %s0, 256, %s16, [#allocation3], 128, 128, 8
    $region5: #{tpu_custom_call.1} parent=1 // pred_fallthru
      _
    // Predicated region
    $region6: #{tpu_custom_call.1} parent=1 // pred_check
      _
    $region7: #{tpu_custom_call.1} parent=1 // pred_check_branch
      %23 = sbr.rel (0) target = $region9
    $region8: #{tpu_custom_call.1} parent=1 // pred_region
      %s25 = ssub.s32 256, 256
      %26 = vsyncadd [#allocation6], %s25
      %s27 = sshll.u32 [#allocation5], 4
      %s28 = int_to_ptr.vmem [resolvable:$true] %s27
      %33 = dma.hbm_to_vmem [thread:$0]  %s1, 256, %s28, [#allocation6], 128, 128, 8
    $region9: #{tpu_custom_call.1} parent=1 // pred_fallthru
      _
    // Predicated region
    $region10: #{tpu_custom_call.1} parent=1 // pred_check
      _
    $region11: #{tpu_custom_call.1} parent=1 // pred_check_branch
      %35 = sbr.rel (0) target = $region13
    $region12: #{tpu_custom_call.1} parent=1 // pred_region
      %36 = dma.done [#allocation3], 256
    $region13: #{tpu_custom_call.1} parent=1 // pred_fallthru
      _
    // Predicated region
    $region14: #{tpu_custom_call.1} parent=1 // pred_check
      _
    $region15: #{tpu_custom_call.1} parent=1 // pred_check_branch
      %38 = sbr.rel (0) target = $region17
    $region16: #{tpu_custom_call.1} parent=1 // pred_region
      %39 = dma.done [#allocation6], 256
    $region17: #{tpu_custom_call.1} parent=1 // pred_fallthru
      _
    %v40 = vld [vmem:[#allocation2] sm:$0xff]
    %v41 = vld [vmem:[#allocation2 + $0x8] sm:$0xff]
    %v42 = vld [vmem:[#allocation5] sm:$0xff]
    %v43 = vld [vmem:[#allocation5 + $0x8] sm:$0xff]
    %vm44 = vcmp.lt.f32.partialorder %v42, 10.0
    %vm45 = vcmp.lt.f32.partialorder %v43, 10.0
    %v46 = vsel %vm44, 0.0, %v42
    %v47 = vsel %vm45, 0.0, %v43
    %vm48 = vcmp.lt.f32.partialorder %v46, 20.0
    %vm49 = vcmp.lt.f32.partialorder %v47, 20.0
    %v50 = vsel %vm48, 1.0, %v46
    %v51 = vsel %vm49, 1.0, %v47
    %vm52 = vcmp.lt.f32.partialorder %v50, 30.0
    %vm53 = vcmp.lt.f32.partialorder %v51, 30.0
    %v54 = vsel %vm52, 2.0, %v50
    %v55 = vsel %vm53, 2.0, %v51
    %vm56 = vcmp.lt.f32.partialorder %v54, 40.0
    %vm57 = vcmp.lt.f32.partialorder %v55, 40.0
    %v58 = vsel %vm56, 3.0, %v54
    %v59 = vsel %vm57, 3.0, %v55
    %vm60 = vcmp.lt.f32.partialorder %v58, 50.0
    %vm61 = vcmp.lt.f32.partialorder %v59, 50.0
    %v62 = vsel %vm60, 4.0, %v58
    %v63 = vsel %vm61, 4.0, %v59
    %vm64 = vcmp.lt.f32.partialorder %v62, 60.0
    %vm65 = vcmp.lt.f32.partialorder %v63, 60.0
    %v66 = vsel %vm64, 5.0, %v62
    %v67 = vsel %vm65, 5.0, %v63
    %v68 = vsub.f32 %v40, %v42
    %v69 = vsub.f32 %v41, %v43
    %v70 = vmul.f32 %v68, %v68
    %v71 = vmul.f32 %v69, %v69
    %v72 = vand.u32 2147483647, %v68
    %v73 = vand.u32 2147483647, %v69
    %v74 = vadd.f32 %v70, %v72
    %v75 = vadd.f32 %v71, %v73
    %v76 = vmul.f32 %v66, %v74
    %v77 = vmul.f32 %v67, %v75
    %v78 = vadd.f32 %v76, %v77
    %79 = vst [vmem:[#allocation7] sm:$0xff] %v78
    // Predicated region
    $region18: #{tpu_custom_call.1} parent=1 // pred_check
      _
    $region19: #{tpu_custom_call.1} parent=1 // pred_check_branch
      %81 = sbr.rel (0) target = $region21
    $region20: #{tpu_custom_call.1} parent=1 // pred_region
      %s83 = ssub.s32 128, 128
      %84 = vsyncadd [#allocation4], %s83
      %s86 = sshll.u32 [#allocation7], 4
      %s87 = int_to_ptr.vmem [resolvable:$true] %s86
      %89 = dma.vmem_to_hbm [thread:$0]  %s87, 128, %s2, [#allocation4]
    $region21: #{tpu_custom_call.1} parent=1 // pred_fallthru
      _
    // Predicated region
    $region22: #{tpu_custom_call.1} parent=1 // pred_check
      _
    $region23: #{tpu_custom_call.1} parent=1 // pred_check_branch
      %91 = sbr.rel (0) target = $region25
    $region24: #{tpu_custom_call.1} parent=1 // pred_region
      %92 = dma.done [#allocation4], 128
    $region25: #{tpu_custom_call.1} parent=1 // pred_fallthru
      _
    %93 = vsyncpa [#allocation3], 1
    %94 = vsyncpa [#allocation6], 1
    %95 = vsyncpa [#allocation4], 1

</llo_original>
